<compile_context>
chip_gen: v5e
topology: v5e:2x2
jax: 0.10.0
libtpu: 0.0.40
codegen_flags: <defaults>
</compile_context>

<pallas_src>
import functools

import jax
import jax.numpy as jnp
from jax import lax
from jax.experimental import pallas as pl
from jax.experimental.pallas import tpu as pltpu


def _vmem_capacity_bytes(default=64 << 20):
    """Physical VMEM of the local TPU; conservative fallback if unknown."""
    try:
        return int(pltpu.get_tpu_info().vmem_capacity_bytes)
    except Exception:
        return default


def _default_tiles():
    """Generation-aware (row tile, column tile) defaults."""
    kind = ""
    try:
        kind = jax.devices()[0].device_kind.lower()
    except Exception:
        pass
    if "v6" in kind:
        # v6e: 918 TF/s vs ~1.4 TB/s -> ~640 flop/byte crossover.  A big row
        # tile cuts the re-streamed F2 traffic and crosses the HBM roofline.
        return 1024, 256
    # v5e (~240 flop/byte crossover) and v7x (~310, but only 64 MiB VMEM):
    # tm ~= 512 is enough; keep the per-step footprint modest.
    return 512, 256


def _mmcl_kernel(f1_ref, f2_ref, topk_ref, acc_ref, *,
                 gamma, tm, tn, k, bs, mask_cols):
    """One (tm, tn) tile of raw RBF dots, reduced on the fly.

    f1_ref:   (tm, D)     anchor view-1 rows for row tile i
    f2_ref:   (tn, D)     view-2 rows for column tile j
    topk_ref: (1, tm, k)  per-row top-k hardest negatives (kernel values)
    acc_ref:  (tm, k)     running top-k of raw dots (VMEM scratch)
    """
    i = pl.program_id(0)            # row tile    ("parallel" / CORE_PARALLEL)
    j = pl.program_id(1)            # column tile ("arbitrary", innermost)
    nj = pl.num_programs(1)

    @pl.when(j == 0)
    def _init():
        acc_ref[...] = jnp.full(acc_ref.shape, -jnp.inf, dtype=acc_ref.dtype)

    # (tm, D) . (tn, D)^T on the MXU, transpose-free, f32 accumulation.  No
    # exp here: exp is strictly monotone, so top-k on raw dots selects the
    # same elements; the single exp happens on the (tm, k) accumulator below.
    dots = lax.dot_general(
        f1_ref[...], f2_ref[...],
        dimension_numbers=(((1,), (1,)), ((), ())),
        preferred_element_type=jnp.float32)

    # Masks from local iotas + per-step scalar offsets (cheap VPU work).
    row_ids = lax.broadcasted_iota(jnp.int32, (tm, tn), 0)
    col_ids = lax.broadcasted_iota(jnp.int32, (tm, tn), 1)
    # global diagonal: i*tm + r == j*tn + c  <=>  r - c == j*tn - i*tm
    kill = (row_ids - col_ids) == (j * tn - i * tm)
    if mask_cols:                        # out-of-range columns of a tail tile
        kill = jnp.logical_or(kill, col_ids >= bs - j * tn)
    neg = jnp.where(kill, -jnp.inf, dots)

    if k == 1:
        acc_ref[...] = jnp.maximum(acc_ref[...],
                                   jnp.max(neg, axis=1, keepdims=True))
    else:
        # Streaming top-k: merge the running accumulator with this tile via k
        # unrolled max passes, removing exactly one occurrence per pick
        # (tie/duplicate safe).  Picked columns are gathered in registers and
        # the accumulator is written with a single store (no k masked
        # sub-128-lane stores).  Next lever if the bundle shows the 2k
        # cross-lane reductions saturating the XLU: pack value+lane into one
        # sortable key so each pick needs a single reduction.
        work_a = acc_ref[...]                            # (tm, k)
        work_n = neg                                     # (tm, tn)
        lane_a = lax.broadcasted_iota(jnp.int32, (tm, k), 1)
        lane_n = col_ids
        cols = []
        for t in range(k):                               # k is small; unroll
            ma = jnp.max(work_a, axis=1, keepdims=True)
            mn = jnp.max(work_n, axis=1, keepdims=True)
            cols.append(jnp.maximum(ma, mn))
            from_a = ma >= mn
            pa = jnp.min(jnp.where(work_a == ma, lane_a, k),
                         axis=1, keepdims=True)
            pn = jnp.min(jnp.where(work_n == mn, lane_n, tn),
                         axis=1, keepdims=True)
            work_a = jnp.where(jnp.logical_and(from_a, lane_a == pa),
                               -jnp.inf, work_a)
            work_n = jnp.where(jnp.logical_and(jnp.logical_not(from_a),
                                               lane_n == pn),
                               -jnp.inf, work_n)
        acc_ref[...] = jnp.concatenate(cols, axis=1)

    @pl.when(j == nj - 1)
    def _finalize():
        # The only exp in the kernel: (tm, k) elements, once per row tile.
        topk_ref[0] = jnp.exp(2.0 * gamma * acc_ref[...] - 2.0 * gamma)


def mmcl_hard_negative_forward(features, *, sigma=0.07, k_negatives=1,
                               tile_rows=None, tile_cols=None,
                               matmul_dtype=jnp.bfloat16,
                               core_parallel_rows=False):
    """JAX/Pallas equivalent of MMCL_HardNegative.forward.

    features: (batch_size, 2, embed_dim) -> (-pos_loss, hard_neg_loss).

    matmul_dtype: dtype the MXU operands are cast to (default bf16: native MXU
      rate + half the re-streamed HBM bytes; accumulation stays f32).  Pass
      None to keep the input dtype (exact f32 matmul for f32 inputs).
    core_parallel_rows: set True on multi-TensorCore chips (v7x) to split the
      row-tile axis across TensorCores via pltpu.CORE_PARALLEL.
    """
    bs, anchor_count, d = features.shape
    if anchor_count != 2:
        raise ValueError("MMCL_HardNegative assumes anchor_count=2.")
    k = max(0, min(int(k_negatives), bs - 1))
    gamma = 1.0 / float(sigma)

    f1 = features[:, 0, :]
    f2 = features[:, 1, :]

    # Positive pairs only need the diagonal of F1 @ F2^T, i.e. an O(bs*D)
    # rowsum.  Keep it in f32 on the XLA side (no kernel output, and no
    # square-tiling constraint in the kernel).
    pos = jnp.exp(
        2.0 * gamma * jnp.sum(f1.astype(jnp.float32) * f2.astype(jnp.float32),
                              axis=-1) - 2.0 * gamma)
    pos_loss = jnp.mean(pos)

    if k == 0:
        return -pos_loss, jnp.float32(0.0)

    # MXU operands (the cast subsumes the view-slice materialization).
    if matmul_dtype is not None:
        f1 = f1.astype(matmul_dtype)
        f2 = f2.astype(matmul_dtype)

    # Rectangular, generation-aware tiling.  The F2 column tile is re-streamed
    # from HBM for every row tile, so arithmetic intensity ~ tm flops/byte;
    # raise tm up to the chip's roofline crossover, keep tn at 256.
    def_tm, def_tn = _default_tiles()
    tm = int(tile_rows) if tile_rows is not None else def_tm
    tn = int(tile_cols) if tile_cols is not None else def_tn
    tm = bs if tm >= bs else max(8, (tm // 8) * 8)
    tn = bs if tn >= bs else max(8, (tn // 8) * 8)

    op_bytes = jnp.dtype(f1.dtype).itemsize
    vmem_budget = int(0.75 * _vmem_capacity_bytes())  # ~48 MiB v7x, ~96 v5e/v6e

    def _vmem_est(tm_, tn_):
        return (2 * (tm_ + tn_) * d * op_bytes        # double-buffered tiles
                + (8 + 2 * k) * tm_ * tn_ * 4         # f32 (tm,tn) temporaries
                + 3 * tm_ * k * 4                     # out block + scratch
                + (4 << 20))                          # headroom

    if tile_rows is None:                 # auto tiles: shrink tm if D is huge
        while tm > max(tn, 256) and _vmem_est(tm, tn) > vmem_budget:
            tm //= 2
    vmem_limit = int(min(max(_vmem_est(tm, tn), 32 << 20), vmem_budget))

    nt_rows = -(-bs // tm)
    nt_cols = -(-bs // tn)

    kernel = functools.partial(
        _mmcl_kernel, gamma=gamma, tm=tm, tn=tn, k=k, bs=bs,
        mask_cols=(bs % tn != 0))

    if core_parallel_rows and nt_rows >= 2:
        dim_sem = (pltpu.CORE_PARALLEL, pltpu.ARBITRARY)
    else:
        dim_sem = ("parallel", "arbitrary")

    cost = pl.CostEstimate(
        flops=2 * nt_rows * tm * nt_cols * tn * d,
        transcendentals=nt_rows * tm * k,
        bytes_accessed=(op_bytes * d * (nt_rows * tm + nt_rows * nt_cols * tn)
                        + 4 * nt_rows * tm * k))

    topk_out = pl.pallas_call(
        kernel,
        grid=(nt_rows, nt_cols),
        in_specs=[
            pl.BlockSpec((tm, d), lambda i, j: (i, 0)),   # F1 row tile
            pl.BlockSpec((tn, d), lambda i, j: (j, 0)),   # F2 column tile
        ],
        out_specs=pl.BlockSpec((1, tm, k), lambda i, j: (i, 0, 0)),
        out_shape=jax.ShapeDtypeStruct((nt_rows, tm, k), jnp.float32),
        scratch_shapes=[pltpu.VMEM((tm, k), jnp.float32)],
        compiler_params=pltpu.CompilerParams(
            dimension_semantics=dim_sem,
            vmem_limit_bytes=vmem_limit),
        cost_estimate=cost,
    )(f1, f2)

    # Drop rows from partial tail tiles before the mean.
    hard_neg_loss = jnp.mean(topk_out.reshape(nt_rows * tm, k)[:bs])
    return -pos_loss, hard_neg_loss


def _reference_forward(features, *, sigma=0.07, k_negatives=1,
                       matmul_dtype=None):
    """Pure-JAX reference matching the PyTorch module semantics.

    matmul_dtype mirrors the kernel's operand cast for the negative-selection
    matmul (positives are always f32, as in the Pallas wrapper).
    """
    bs = features.shape[0]
    f1 = features[:, 0, :].astype(jnp.float32)
    f2 = features[:, 1, :].astype(jnp.float32)
    gamma = 1.0 / float(sigma)
    pos_loss = jnp.mean(jnp.exp(-gamma * (2.0 - 2.0 * jnp.sum(f1 * f2, -1))))
    k = max(0, min(int(k_negatives), bs - 1))
    if k == 0:
        return -pos_loss, jnp.float32(0.0)
    if matmul_dtype is not None:
        a, b = f1.astype(matmul_dtype), f2.astype(matmul_dtype)
    else:
        a, b = f1, f2
    dots = jnp.dot(a, b.T, preferred_element_type=jnp.float32)
    kmat = jnp.exp(-gamma * (2.0 - 2.0 * dots))
    neg = jnp.where(jnp.eye(bs, dtype=bool), -jnp.inf, kmat)
    topk_vals, _ = lax.top_k(neg, k)
    return -pos_loss, jnp.mean(topk_vals)


if __name__ == "__main__":
    def _check(bs, d, sigma, k_negatives, *, tile_rows=None, tile_cols=None,
               matmul_dtype=jnp.bfloat16, rtol=1e-2):
        key = jax.random.PRNGKey(0)
        feats = jax.random.normal(key, (bs, 2, d), dtype=jnp.float32)
        # L2-normalize embeddings (standard for contrastive features).
        feats = feats / jnp.linalg.norm(feats, axis=-1, keepdims=True)
        out = mmcl_hard_negative_forward(
            feats, sigma=sigma, k_negatives=k_negatives,
            tile_rows=tile_rows, tile_cols=tile_cols,
            matmul_dtype=matmul_dtype)
        out = jax.block_until_ready(out)
        ref = _reference_forward(feats, sigma=sigma, k_negatives=k_negatives,
                                 matmul_dtype=matmul_dtype)
        for got, want in zip(out, ref):
            assert jnp.allclose(got, want, rtol=rtol, atol=1e-6), (got, want)

    # Default MMCL_HardNegative config: k_negatives=1, single tile.
    _check(bs=8, d=32, sigma=0.07, k_negatives=1)
    # Multi-tile path: partial tail tiles on both axes + streaming top-k, k>1.
    _check(bs=20, d=16, sigma=0.07, k_negatives=3, tile_rows=8, tile_cols=8)
    # Rectangular tiles (tm != tn), diagonal spanning several column tiles.
    _check(bs=44, d=24, sigma=0.07, k_negatives=5, tile_rows=16, tile_cols=8)
    # k_negatives larger than bs-1 -> clamped, like the PyTorch module.
    _check(bs=6, d=8, sigma=0.07, k_negatives=10)

    print("KERNEL_OK")
</pallas_src>

<mosaic_0001>
module attributes {stable_mosaic.version = 11 : i64} {
  func.func @_mmcl_kernel(%arg0: i32, %arg1: i32, %arg2: memref<8x32xbf16, #tpu.memory_space<vmem>>, %arg3: memref<8x32xbf16, #tpu.memory_space<vmem>>, %arg4: memref<1x8x1xf32, #tpu.memory_space<vmem>>, %arg5: memref<8x1xf32, #tpu.memory_space<vmem>>) attributes {dimension_semantics = [#tpu.dimension_semantics<parallel>, #tpu.dimension_semantics<arbitrary>], iteration_bounds = array<i64: 1, 1>, scalar_prefetch = 0 : i64, scratch_operands = 1 : i64, tpu.core_type = #tpu.core_type<tc>, window_params = [{transform_indices = @transform_0, window_bounds = array<i64: 8, 32>}, {transform_indices = @transform_1, window_bounds = array<i64: 8, 32>}, {transform_indices = @transform_2, window_bounds = array<i64: 1, 8, 1>}]} {
    %c0_i32 = arith.constant 0 : i32
    %0 = arith.cmpi eq, %arg1, %c0_i32 : i32
    %1 = arith.extui %0 : i1 to i32
    %c0_i32_0 = arith.constant 0 : i32
    %2 = arith.cmpi ne, %1, %c0_i32_0 : i32
    scf.if %2 {
      %cst_13 = arith.constant 0xFF800000 : f32
      %24 = vector.broadcast %cst_13 : f32 to vector<8x1xf32>
      %c0_14 = arith.constant 0 : index
      %c0_15 = arith.constant 0 : index
      %25 = vector.load %arg5[%c0_14, %c0_15] : memref<8x1xf32, #tpu.memory_space<vmem>>, vector<8x1xf32>
      tpu.vector_store %arg5[%c0_14, %c0_15], %24 {strides = array<i32>} : memref<8x1xf32, #tpu.memory_space<vmem>>, vector<8x1xf32>,
    } else {
    }
    %c0 = arith.constant 0 : index
    %c0_1 = arith.constant 0 : index
    %3 = vector.load %arg2[%c0, %c0_1] : memref<8x32xbf16, #tpu.memory_space<vmem>>, vector<8x32xbf16>
    %c0_2 = arith.constant 0 : index
    %c0_3 = arith.constant 0 : index
    %4 = vector.load %arg3[%c0_2, %c0_3] : memref<8x32xbf16, #tpu.memory_space<vmem>>, vector<8x32xbf16>
    %cst = arith.constant dense<0.000000e+00> : vector<8x8xf32>
    %5 = tpu.matmul %3, %4, %cst {dimension_numbers = #tpu.dot_dimension_numbers<[1], [1], [0], [0], [0, 0, 1, 0], [], []>} : vector<8x32xbf16>, vector<8x32xbf16>, vector<8x8xf32> -> vector<8x8xf32>
    %6 = tpu.iota {dimensions = array<i32: 0>} : vector<8x8xi32>
    %7 = tpu.iota {dimensions = array<i32: 1>} : vector<8x8xi32>
    %8 = arith.subi %6, %7 : vector<8x8xi32>
    %c8_i32 = arith.constant 8 : i32
    %9 = arith.muli %arg1, %c8_i32 : i32
    %c8_i32_4 = arith.constant 8 : i32
    %10 = arith.muli %arg0, %c8_i32_4 : i32
    %11 = arith.subi %9, %10 : i32
    %12 = vector.broadcast %11 : i32 to vector<8x8xi32>
    %13 = arith.cmpi eq, %8, %12 : vector<8x8xi32>
    %cst_5 = arith.constant 0xFF800000 : f32
    %14 = vector.broadcast %cst_5 : f32 to vector<8x8xf32>
    %15 = arith.select %13, %14, %5 : vector<8x8xi1>, vector<8x8xf32>
    %c0_6 = arith.constant 0 : index
    %c0_7 = arith.constant 0 : index
    %16 = vector.load %arg5[%c0_6, %c0_7] : memref<8x1xf32, #tpu.memory_space<vmem>>, vector<8x1xf32>
    %cst_8 = arith.constant dense<0xFF800000> : vector<8xf32>
    %17 = vector.multi_reduction <maximumf>, %15, %cst_8 [1] : vector<8x8xf32> to vector<8xf32>
    %18 = vector.shape_cast %17 : vector<8xf32> to vector<8x1xf32>
    %19 = arith.maximumf %16, %18 : vector<8x1xf32>
    %c0_9 = arith.constant 0 : index
    %c0_10 = arith.constant 0 : index
    %20 = vector.load %arg5[%c0_9, %c0_10] : memref<8x1xf32, #tpu.memory_space<vmem>>, vector<8x1xf32>
    tpu.vector_store %arg5[%c0_9, %c0_10], %19 {strides = array<i32>} : memref<8x1xf32, #tpu.memory_space<vmem>>, vector<8x1xf32>,
    %c0_i32_11 = arith.constant 0 : i32
    %21 = arith.cmpi eq, %arg1, %c0_i32_11 : i32
    %22 = arith.extui %21 : i1 to i32
    %c0_i32_12 = arith.constant 0 : i32
    %23 = arith.cmpi ne, %22, %c0_i32_12 : i32
    scf.if %23 {
      %c0_13 = arith.constant 0 : index
      %c0_14 = arith.constant 0 : index
      %24 = vector.load %arg5[%c0_13, %c0_14] : memref<8x1xf32, #tpu.memory_space<vmem>>, vector<8x1xf32>
      %cst_15 = arith.constant 28.5714283 : f32
      %25 = vector.broadcast %cst_15 : f32 to vector<8x1xf32>
      %26 = arith.mulf %25, %24 : vector<8x1xf32>
      %cst_16 = arith.constant 28.5714283 : f32
      %27 = vector.broadcast %cst_16 : f32 to vector<8x1xf32>
      %28 = arith.subf %26, %27 : vector<8x1xf32>
      %29 = math.exp %28 : vector<8x1xf32>
      %c0_17 = arith.constant 0 : index
      %c0_18 = arith.constant 0 : index
      %c0_19 = arith.constant 0 : index
      %30 = vector.load %arg4[%c0_17, %c0_18, %c0_19] : memref<1x8x1xf32, #tpu.memory_space<vmem>>, vector<1x8x1xf32>
      %31 = vector.shape_cast %30 : vector<1x8x1xf32> to vector<8x1xf32>
      %32 = vector.shape_cast %29 : vector<8x1xf32> to vector<1x8x1xf32>
      tpu.vector_store %arg4[%c0_17, %c0_18, %c0_19], %32 {strides = array<i32>} : memref<1x8x1xf32, #tpu.memory_space<vmem>>, vector<1x8x1xf32>,
    } else {
    }
    return
  }
  func.func @transform_0(%arg0: i32, %arg1: i32) -> (i32, i32) {
    %c0_i32 = arith.constant 0 : i32
    %c0_i32_0 = arith.constant 0 : i32
    return %arg0, %c0_i32 : i32, i32
  }
  func.func @transform_1(%arg0: i32, %arg1: i32) -> (i32, i32) {
    %c0_i32 = arith.constant 0 : i32
    %c0_i32_0 = arith.constant 0 : i32
    return %arg1, %c0_i32 : i32, i32
  }
  func.func @transform_2(%arg0: i32, %arg1: i32) -> (i32, i32, i32) {
    %c0_i32 = arith.constant 0 : i32
    %c0_i32_0 = arith.constant 0 : i32
    %c0_i32_1 = arith.constant 0 : i32
    return %arg0, %c0_i32, %c0_i32_0 : i32, i32, i32
  }
}

</mosaic_0001>

<llo_original>
// kernel: tpu_custom_call.1
$region0: #{tpu_custom_call.1}
  #allocation0 [shape = 'u32[]', space=smem, size = 0x4, offset = 0x4, fixed_abs, tag = 'smem constant byte address 0x4 - core index']
  #allocation1 [shape = 'u32[72,128]{1,0:T(1,128)}', space=vmem, size = 0x9000, scoped, tag = 'internal scratch']
  #allocation2 [shape = 'f32[8,1]{1,0:T(8,128)}', space=vmem, size = 0x1000, scoped, tag = 'scratch operand']
  %s0 = inlined_call_operand.hbm [shape: bf16[8,32], index: 0, kind: input, shape index: {}]
  %s1 = inlined_call_operand.hbm [shape: bf16[8,32], index: 1, kind: input, shape index: {}]
  %s2 = inlined_call_operand.vmem [shape: f32[1,8,1], index: 2, kind: output, shape index: {}]
  %s3 = sld [smem:[#allocation0]]
  $region34: #{tpu_custom_call.1} parent=0
    _
  %s5 = ssub.s32 1, %s3
  %s6 = scalar_select 0, %s5, %s3
  $region1: #{tpu_custom_call.1} parent=0
    #allocation3 [shape = 'u8[2048]{0}', space=vmem, size = 0x800, scoped, tag = 'input window, operand 0, single buffered']
    #allocation4 [shape = 's32[1]{0}', space=sflag, size = 0x4, scoped, tag = 'scoped memory for tpu_custom_call.1']
    #allocation5 [shape = 'u8[2048]{0}', space=vmem, size = 0x800, scoped, tag = 'input window, operand 1, single buffered']
    #allocation6 [shape = 's32[1]{0}', space=sflag, size = 0x4, scoped, tag = 'scoped memory for tpu_custom_call.1']
    %7 = vsyncpa [#allocation4], 0
    %8 = vsyncpa [#allocation6], 0
    // Predicated region
    $region2: #{tpu_custom_call.1} parent=1 // pred_check
      _
    $region3: #{tpu_custom_call.1} parent=1 // pred_check_branch
      %10 = sbr.rel (0) target = $region5
    $region4: #{tpu_custom_call.1} parent=1 // pred_region
      %12 = vsyncadd [#allocation4], 0
      %s14 = sshll.u32 %s0, 4
      %s15 = int_to_ptr.hbm [resolvable:$true] %s14
      %s16 = sshll.u32 [#allocation3], 4
      %s17 = int_to_ptr.vmem [resolvable:$true] %s16
      %19 = dma.hbm_to_vmem [thread:$0]  %s15, 64, %s17, [#allocation4]
    $region5: #{tpu_custom_call.1} parent=1 // pred_fallthru
      _
    // Predicated region
    $region6: #{tpu_custom_call.1} parent=1 // pred_check
      _
    $region7: #{tpu_custom_call.1} parent=1 // pred_check_branch
      %21 = sbr.rel (0) target = $region9
    $region8: #{tpu_custom_call.1} parent=1 // pred_region
      %23 = vsyncadd [#allocation6], 0
      %s25 = sshll.u32 %s1, 4
      %s26 = int_to_ptr.hbm [resolvable:$true] %s25
      %s27 = sshll.u32 [#allocation5], 4
      %s28 = int_to_ptr.vmem [resolvable:$true] %s27
      %30 = dma.hbm_to_vmem [thread:$0]  %s26, 64, %s28, [#allocation6]
    $region9: #{tpu_custom_call.1} parent=1 // pred_fallthru
      _
    // Predicated region
    $region10: #{tpu_custom_call.1} parent=1 // pred_check
      _
    $region11: #{tpu_custom_call.1} parent=1 // pred_check_branch
      %32 = sbr.rel (0) target = $region13
    $region12: #{tpu_custom_call.1} parent=1 // pred_region
      %34 = dma.done [#allocation4], 64
    $region13: #{tpu_custom_call.1} parent=1 // pred_fallthru
      _
    // Predicated region
    $region14: #{tpu_custom_call.1} parent=1 // pred_check
      _
    $region15: #{tpu_custom_call.1} parent=1 // pred_check_branch
      %36 = sbr.rel (0) target = $region17
    $region16: #{tpu_custom_call.1} parent=1 // pred_region
      %38 = dma.done [#allocation6], 64
    $region17: #{tpu_custom_call.1} parent=1 // pred_fallthru
      _
    %p40 = scmp.eq.s32.totalorder 0, 0
    // Predicated region
    $region18: #{tpu_custom_call.1} parent=1 // pred_check
      %p41 = pneg %p40
    $region19: #{tpu_custom_call.1} parent=1 // pred_check_branch
      %43 = sbr.rel (%p41) target = $region21
    $region20: #{tpu_custom_call.1} parent=1 // pred_region
      %vm44 = vcmask 7168
      %45 = vst.msk [vmem:[#allocation2] sm:$0xff] %vm44, -inf
    $region21: #{tpu_custom_call.1} parent=1 // pred_fallthru
      _
    %v46 = vld [vmem:[#allocation3] sm:$0xf]
    %v47 = vld [vmem:[#allocation5] sm:$0xf]
    %vm48 = vcmask 261120
    %v50 = vsel %vm48, %v46, 0
    %v53 = vsel %vm48, %v47, 0
    %55 = vmatpush.bf16.xpose.msra.mxu0 0
    %56 = vmatpush.bf16.xpose.msra.mxu0 0
    %57 = vmatpush.bf16.xpose.msra.mxu0 0
    %58 = vmatpush.bf16.xpose.msra.mxu0 0
    %59 = vmatpush.bf16.xpose.msra.mxu0 0
    %60 = vmatpush.bf16.xpose.msra.mxu0 0
    %61 = vmatpush.bf16.xpose.msra.mxu0 0
    %62 = vmatpush.bf16.xpose.msra.mxu0 %v53
    %63 = vmatmul.bf16.gmra.mxu0 %v50
    %v64 = vpop.f32.mrf.mxu0
    %v65 = vadd.f32 0.0, %v64
    %v66 = vpop.f32.mrf.mxu0
    %67 = vdwg.mxu0
    %v68 = vlaneseq
    %v69 = vshrl.u32 %v68, 7
    %v70 = vlaneseq
    %v71 = vand.u32 %v70, 127
    %v72 = vsub.s32 %v69, %v71
    %s73 = smul.u32 0, 8
    %s74 = smul.u32 0, 8
    %s75 = ssub.s32 %s73, %s74
    %v76 = vstv %s75
    %vm77 = vcmp.eq.s32.totalorder %v72, %v76
    %v78 = vsel %vm77, -inf, %v65
    %v79 = vld [vmem:[#allocation2] sm:$0xff]
    %vm80 = vcmask 64512
    %v81 = vsel %vm80, %v78, -inf
    %82 = vmax.xlane.f32.xlu0 %v81
    %v83 = vpop.xlane.xlu0 %82
    %v84 = vmax.f32 %v79, %v83
    %vm85 = vcmask 7168
    %86 = vst.msk [vmem:[#allocation2] sm:$0xff] %vm85, %v84
    // Predicated region
    $region22: #{tpu_custom_call.1} parent=1 // pred_check
      %p87 = pneg %p40
    $region23: #{tpu_custom_call.1} parent=1 // pred_check_branch
      %89 = sbr.rel (%p87) target = $region25
    $region24: #{tpu_custom_call.1} parent=1 // pred_region
      %v90 = vld [vmem:[#allocation2] sm:$0xff]
      %v91 = vmul.f32 %v90, 28.571428
      %v92 = vsub.f32 %v91, 28.571428
      %v93 = vmul.f32 %v92, 1.442695
      %v94 = vpow.pop %v93
      %95 = vst.msk [vmem:[%s2] sm:$0xff] %vm85, %v94
    $region25: #{tpu_custom_call.1} parent=1 // pred_fallthru
      _
    // Predicated region
    $region26: #{tpu_custom_call.1} parent=1 // pred_check
      _
    $region27: #{tpu_custom_call.1} parent=1 // pred_check_branch
      %97 = sbr.rel (0) target = $region29
    $region28: #{tpu_custom_call.1} parent=1 // pred_region
      _
    $region29: #{tpu_custom_call.1} parent=1 // pred_fallthru
      _
    // Predicated region
    $region30: #{tpu_custom_call.1} parent=1 // pred_check
      _
    $region31: #{tpu_custom_call.1} parent=1 // pred_check_branch
      %99 = sbr.rel (0) target = $region33
    $region32: #{tpu_custom_call.1} parent=1 // pred_region
      _
    $region33: #{tpu_custom_call.1} parent=1 // pred_fallthru
      _
    %100 = vsyncpa [#allocation4], 1
    %101 = vsyncpa [#allocation6], 1

</llo_original>
